<compile_context>
chip_gen: v6e
topology: v6e:2x2x1
jax: 0.10.0
libtpu: 0.0.40
codegen_flags: <defaults>
</compile_context>

<pallas_src>
import numpy as np
import jax
import jax.numpy as jnp
from jax.experimental import pallas as pl
from jax.experimental.pallas import tpu as pltpu

OBS_DIM = 3
SKILL_DIM = 5
HIDDEN_DIM = 32
NUM_COMPONENTS = 4
VARIANCE = 1.0            # Normal scale (std), as in the torch module
BN_EPS = 1e-5
LOG_SQRT_2PI = 0.5 * float(np.log(2.0 * np.pi))
LOG_SCALE_TERM = float(np.log(VARIANCE)) + LOG_SQRT_2PI

IN_DIM = OBS_DIM + SKILL_DIM               # 8  (concat(state, skill))
KOBS = NUM_COMPONENTS * OBS_DIM            # 12
HEAD_DIM = NUM_COMPONENTS + KOBS           # 16 (mix logits ; K component means)
X_ROWS = IN_DIM + OBS_DIM                  # 11 ([state; skill; next_state])
W_ROWS = 2 * HIDDEN_DIM + HEAD_DIM         # 80 (packed weight slab rows)

# packed bias / BN-stat slab layout (rows, 8-aligned groups)
C_B1 = 0
C_B2 = HIDDEN_DIM                          # 32
C_BH = 2 * HIDDEN_DIM                      # 64
C_BN_MEAN = 2 * HIDDEN_DIM + HEAD_DIM      # 80
C_BN_INV = C_BN_MEAN + 8                   # 88
C_ROWS = C_BN_INV + 8                      # 96


def _round_up(x, m):
    return ((x + m - 1) // m) * m


def _cdiv(a, b):
    return -(-a // b)


def _choose_tiling(B, tile_b):
    """Batch-on-lanes tiling: TB multiple of 128; keep >=2 grid steps when possible."""
    B_lane = _round_up(B, 128)
    cap = max(128, (int(tile_b) // 128) * 128)
    steps = _cdiv(B_lane, cap)
    if steps == 1 and B_lane >= 256:
        steps = 2                          # v7x: give both TensorCores a batch tile
    TB = _round_up(_cdiv(B_lane, steps), 128)
    return TB, TB * steps, steps


def dads_kernel(x_ref, w_ref, c_ref, out_ref):
    f32 = jnp.float32
    cd = w_ref.dtype                              # matmul operand dtype (bf16/f32)

    x = x_ref[...]                                # (11, TB) f32 [state;skill;next]
    xin = x[0:IN_DIM, :].astype(cd)               # (8, TB)  concat(state, skill)

    # ---- packed parameter slabs (static row-slices of the VMEM refs) ----
    w1 = w_ref[0:HIDDEN_DIM, 0:IN_DIM]            # (32, 8)
    w2 = w_ref[HIDDEN_DIM:2 * HIDDEN_DIM, :]      # (32, 32)
    wh = w_ref[2 * HIDDEN_DIM:W_ROWS, :]          # (16, 32) [mix ; component means]
    b1 = c_ref[C_B1:C_B1 + HIDDEN_DIM, :]         # (32, 1)
    b2 = c_ref[C_B2:C_B2 + HIDDEN_DIM, :]         # (32, 1)
    bh = c_ref[C_BH:C_BH + HEAD_DIM, :]           # (16, 1)
    bn_mean = c_ref[C_BN_MEAN:C_BN_MEAN + OBS_DIM, :]   # (3, 1)
    bn_inv = c_ref[C_BN_INV:C_BN_INV + OBS_DIM, :]      # (3, 1)

    # ---- trunk: Linear -> ReLU -> Linear -> ReLU (batch on the MXU N dim) ----
    h = jnp.dot(w1, xin, preferred_element_type=f32) + b1
    h = jnp.maximum(h, 0.0)
    h = jnp.dot(w2, h.astype(cd), preferred_element_type=f32) + b2
    h = jnp.maximum(h, 0.0)                       # (32, TB) f32

    # ---- fused head: rows 0:4 mixture logits, rows 4:16 component means ----
    head = jnp.dot(wh, h.astype(cd), preferred_element_type=f32) + bh   # (16, TB)

    # ---- process_obs: BatchNorm1d(affine=False), batch stats hoisted out ----
    delta = x[IN_DIM:IN_DIM + OBS_DIM, :] - x[0:OBS_DIM, :]             # (3, TB)
    s_pred = (delta - bn_mean) * bn_inv

    # ---- per-component squared distance + log-prob (f32 VPU adds, no MXU) ----
    inv_scale = 1.0 / VARIANCE
    abs_means = None
    comp_logp = []
    for k in range(NUM_COMPONENTS):               # unrolled at trace time (K=4)
        lo = NUM_COMPONENTS + OBS_DIM * k
        mu = head[lo:lo + OBS_DIM, :]             # (3, TB)
        d = s_pred - mu
        if VARIANCE != 1.0:                       # static fold: no mul when scale==1
            d = d * inv_scale
        sq = d * d
        csq = sq[0:1, :] + sq[1:2, :] + sq[2:3, :]          # (1, TB)
        comp_logp.append(-0.5 * csq - OBS_DIM * LOG_SCALE_TERM)
        am = jnp.abs(mu)
        ams = am[0:1, :] + am[1:2, :] + am[2:3, :]
        abs_means = ams if abs_means is None else abs_means + ams

    # ---- MixtureSameFamily.log_prob = logsumexp(log_softmax(mix) + comp_logp) ----
    mix = [head[k:k + 1, :] for k in range(NUM_COMPONENTS)]             # 4x (1, TB)
    m_max = jnp.maximum(jnp.maximum(mix[0], mix[1]), jnp.maximum(mix[2], mix[3]))
    m_sum = (jnp.exp(mix[0] - m_max) + jnp.exp(mix[1] - m_max)
             + jnp.exp(mix[2] - m_max) + jnp.exp(mix[3] - m_max))
    log_norm = m_max + jnp.log(m_sum)
    zc = [mix[k] - log_norm + comp_logp[k] for k in range(NUM_COMPONENTS)]
    z_max = jnp.maximum(jnp.maximum(zc[0], zc[1]), jnp.maximum(zc[2], zc[3]))
    z_sum = (jnp.exp(zc[0] - z_max) + jnp.exp(zc[1] - z_max)
             + jnp.exp(zc[2] - z_max) + jnp.exp(zc[3] - z_max))
    logprob = z_max + jnp.log(z_sum)              # (1, TB)

    # ---- per-column partial sums for the info scalars (finished in XLA) ----
    asp = jnp.abs(s_pred)
    abs_spred = asp[0:1, :] + asp[1:2, :] + asp[2:3, :]
    adl = jnp.abs(delta)
    abs_delta = adl[0:1, :] + adl[1:2, :] + adl[2:3, :]

    # lane-dense output: four full-lane-width row stores
    out_ref[0:1, :] = logprob
    out_ref[1:2, :] = abs_means
    out_ref[2:3, :] = abs_spred
    out_ref[3:4, :] = abs_delta


def dads_forward(state, next_state, skill, params, *,
                 tile_b=4096, compute_dtype=jnp.bfloat16):
    """Pallas DADS forward. Returns (prob_delta[B], info dict) like DADS.forward."""
    state = state.astype(jnp.float32)
    next_state = next_state.astype(jnp.float32)
    skill = skill.astype(jnp.float32)
    B = state.shape[0]

    # ---- full-batch BatchNorm statistics (training mode, biased variance) ----
    delta = next_state - state
    bn_mean = jnp.mean(delta, axis=0)
    bn_var = jnp.mean(jnp.square(delta - bn_mean), axis=0)
    bn_inv = jax.lax.rsqrt(bn_var + BN_EPS)

    # ---- batch tiling: batch is the lane axis -> TB multiple of 128 ----
    TB, B_pad, steps = _choose_tiling(B, tile_b)

    # ---- input slab: feature-major (11, B_pad) = [state; skill; next_state] ----
    # (layout plumbing only; a caller storing feature-major data can skip this)
    x = jnp.concatenate([state, skill, next_state], axis=1)             # (B, 11)
    if B_pad != B:
        x = jnp.pad(x, ((0, B_pad - B), (0, 0)))
    x_slab = x.T                                                        # (11, B_pad)

    # ---- packed parameter slabs: one weight slab, one bias/BN-stat slab ----
    cd = compute_dtype
    w1_blk = jnp.zeros((HIDDEN_DIM, HIDDEN_DIM), jnp.float32)
    w1_blk = w1_blk.at[:, :IN_DIM].set(jnp.asarray(params["w1"], jnp.float32).T)
    wmix_t = jnp.asarray(params["wmix"], jnp.float32).T                 # (4, 32)
    wcomp_t = jnp.transpose(jnp.asarray(params["wcomp"], jnp.float32),
                            (0, 2, 1)).reshape(KOBS, HIDDEN_DIM)        # (12, 32)
    w_slab = jnp.concatenate(
        [w1_blk, jnp.asarray(params["w2"], jnp.float32).T, wmix_t, wcomp_t],
        axis=0).astype(cd)                                              # (80, 32)

    c_slab = jnp.zeros((C_ROWS,), jnp.float32)
    c_slab = c_slab.at[C_B1:C_B1 + HIDDEN_DIM].set(params["b1"].reshape(-1))
    c_slab = c_slab.at[C_B2:C_B2 + HIDDEN_DIM].set(params["b2"].reshape(-1))
    c_slab = c_slab.at[C_BH:C_BH + NUM_COMPONENTS].set(params["bmix"].reshape(-1))
    c_slab = c_slab.at[C_BH + NUM_COMPONENTS:C_BH + HEAD_DIM].set(
        params["bcomp"].reshape(-1))
    c_slab = c_slab.at[C_BN_MEAN:C_BN_MEAN + OBS_DIM].set(bn_mean)
    c_slab = c_slab.at[C_BN_INV:C_BN_INV + OBS_DIM].set(bn_inv)
    c_slab = c_slab.reshape(C_ROWS, 1)                                  # (96, 1)

    grid_spec = pltpu.PrefetchScalarGridSpec(
        num_scalar_prefetch=0,
        grid=(steps,),
        in_specs=[
            pl.BlockSpec((X_ROWS, TB), lambda i: (0, i)),
            pl.BlockSpec((W_ROWS, HIDDEN_DIM), lambda i: (0, 0)),
            pl.BlockSpec((C_ROWS, 1), lambda i: (0, 0)),
        ],
        out_specs=pl.BlockSpec((4, TB), lambda i: (0, i)),
    )
    out = pl.pallas_call(
        dads_kernel,
        out_shape=jax.ShapeDtypeStruct((4, B_pad), jnp.float32),
        grid_spec=grid_spec,
        compiler_params=pltpu.CompilerParams(
            dimension_semantics=("parallel",)),
    )(x_slab, w_slab, c_slab)

    out = out[:, :B]                               # drop batch-padding columns
    prob_delta = out[0]
    info = {
        "dads_mean": jnp.sum(out[1]) / (B * NUM_COMPONENTS * OBS_DIM),
        "s_predict": jnp.sum(out[2]) / (B * OBS_DIM),
        "s_predict_raw": jnp.sum(out[3]) / (B * OBS_DIM),
    }
    return prob_delta, info


def dads_reference(state, next_state, skill, params):
    """Pure-JAX reference of the same forward pass (for correctness check)."""
    x = jnp.concatenate([state, skill], axis=1)
    h = jax.nn.relu(x @ params["w1"] + params["b1"])
    h = jax.nn.relu(h @ params["w2"] + params["b2"])
    mix_logits = h @ params["wmix"] + params["bmix"]
    means = jnp.stack(
        [h @ params["wcomp"][k] + params["bcomp"][k][0] for k in range(NUM_COMPONENTS)],
        axis=1)                                                     # [B, K, obs]
    delta = next_state - state
    mu = delta.mean(0)
    var = ((delta - mu) ** 2).mean(0)
    s_pred = (delta - mu) / jnp.sqrt(var + BN_EPS)
    scale = VARIANCE
    comp_lp = (-0.5 * (((s_pred[:, None, :] - means) / scale) ** 2).sum(-1)
               - OBS_DIM * (np.log(scale) + LOG_SQRT_2PI))
    log_mix = jax.nn.log_softmax(mix_logits, axis=-1)
    logprob = jax.scipy.special.logsumexp(log_mix + comp_lp, axis=-1)
    info = {
        "dads_mean": jnp.mean(jnp.abs(means)),
        "s_predict": jnp.mean(jnp.abs(s_pred)),
        "s_predict_raw": jnp.mean(jnp.abs(delta)),
    }
    return logprob, info


def init_params(key):
    ks = jax.random.split(key, 8)
    in_dim = OBS_DIM + SKILL_DIM
    return {
        "w1": 0.1 * jax.random.normal(ks[0], (in_dim, HIDDEN_DIM), jnp.float32),
        "b1": 0.1 * jax.random.normal(ks[1], (1, HIDDEN_DIM), jnp.float32),
        "w2": 0.1 * jax.random.normal(ks[2], (HIDDEN_DIM, HIDDEN_DIM), jnp.float32),
        "b2": 0.1 * jax.random.normal(ks[3], (1, HIDDEN_DIM), jnp.float32),
        "wmix": 0.1 * jax.random.normal(ks[4], (HIDDEN_DIM, NUM_COMPONENTS), jnp.float32),
        "bmix": 0.1 * jax.random.normal(ks[5], (1, NUM_COMPONENTS), jnp.float32),
        "wcomp": 0.1 * jax.random.normal(ks[6], (NUM_COMPONENTS, HIDDEN_DIM, OBS_DIM), jnp.float32),
        "bcomp": 0.1 * jax.random.normal(ks[7], (NUM_COMPONENTS, 1, OBS_DIM), jnp.float32),
    }


if __name__ == "__main__":
    key = jax.random.PRNGKey(0)
    k_par, k_s, k_ns, k_z, k_s2, k_ns2, k_z2, k_s3, k_ns3, k_z3 = jax.random.split(key, 10)
    params = init_params(k_par)

    # ---- case 1: small batch, single tile, bf16 matmul operands (default) ----
    B = 8
    state = jax.random.normal(k_s, (B, OBS_DIM), jnp.float32)
    next_state = state + 0.1 * jax.random.normal(k_ns, (B, OBS_DIM), jnp.float32)
    skill = jax.random.normal(k_z, (B, SKILL_DIM), jnp.float32)

    prob, info = dads_forward(state, next_state, skill, params)
    prob = jax.block_until_ready(prob)
    info = jax.tree_util.tree_map(jax.block_until_ready, info)
    ref_prob, ref_info = dads_reference(state, next_state, skill, params)
    np.testing.assert_allclose(np.asarray(prob), np.asarray(ref_prob),
                               rtol=5e-2, atol=2.5e-1)
    np.testing.assert_allclose(np.asarray(info["dads_mean"]),
                               np.asarray(ref_info["dads_mean"]),
                               rtol=5e-2, atol=2e-2)
    np.testing.assert_allclose(np.asarray(info["s_predict"]),
                               np.asarray(ref_info["s_predict"]),
                               rtol=1e-3, atol=2e-3)
    np.testing.assert_allclose(np.asarray(info["s_predict_raw"]),
                               np.asarray(ref_info["s_predict_raw"]),
                               rtol=1e-3, atol=2e-3)

    # ---- case 2: f32 operands, multi-tile grid + padding (B=300 -> TB=128, grid=3) ----
    B2 = 300
    state2 = jax.random.normal(k_s2, (B2, OBS_DIM), jnp.float32)
    next2 = state2 + 0.1 * jax.random.normal(k_ns2, (B2, OBS_DIM), jnp.float32)
    skill2 = jax.random.normal(k_z2, (B2, SKILL_DIM), jnp.float32)
    prob2, info2 = dads_forward(state2, next2, skill2, params,
                                tile_b=128, compute_dtype=jnp.float32)
    prob2 = jax.block_until_ready(prob2)
    ref_prob2, ref_info2 = dads_reference(state2, next2, skill2, params)
    np.testing.assert_allclose(np.asarray(prob2), np.asarray(ref_prob2),
                               rtol=1e-3, atol=2e-2)
    for kname in ("dads_mean", "s_predict", "s_predict_raw"):
        np.testing.assert_allclose(np.asarray(info2[kname]),
                                   np.asarray(ref_info2[kname]),
                                   rtol=1e-3, atol=2e-3)

    # ---- case 3: default tile, bf16, batch large enough for the 2-step grid split ----
    B3 = 600
    state3 = jax.random.normal(k_s3, (B3, OBS_DIM), jnp.float32)
    next3 = state3 + 0.1 * jax.random.normal(k_ns3, (B3, OBS_DIM), jnp.float32)
    skill3 = jax.random.normal(k_z3, (B3, SKILL_DIM), jnp.float32)
    prob3, info3 = dads_forward(state3, next3, skill3, params)
    prob3 = jax.block_until_ready(prob3)
    ref_prob3, ref_info3 = dads_reference(state3, next3, skill3, params)
    np.testing.assert_allclose(np.asarray(prob3), np.asarray(ref_prob3),
                               rtol=5e-2, atol=2.5e-1)
    np.testing.assert_allclose(np.asarray(info3["dads_mean"]),
                               np.asarray(ref_info3["dads_mean"]),
                               rtol=5e-2, atol=2e-2)
    np.testing.assert_allclose(np.asarray(info3["s_predict_raw"]),
                               np.asarray(ref_info3["s_predict_raw"]),
                               rtol=1e-3, atol=2e-3)

    print("KERNEL_OK")
</pallas_src>

<mosaic_0001>
module attributes {stable_mosaic.version = 11 : i64} {
  func.func @dads_kernel(%arg0: i32, %arg1: memref<11x128xf32, #tpu.memory_space<vmem>>, %arg2: memref<80x32xbf16, #tpu.memory_space<vmem>>, %arg3: memref<96x1xf32, #tpu.memory_space<vmem>>, %arg4: memref<4x128xf32, #tpu.memory_space<vmem>>) attributes {dimension_semantics = [#tpu.dimension_semantics<parallel>], iteration_bounds = array<i64: 1>, scalar_prefetch = 0 : i64, scratch_operands = 0 : i64, tpu.core_type = #tpu.core_type<tc>, window_params = [{transform_indices = @transform_0, window_bounds = array<i64: 11, 128>}, {pipeline_mode = #tpu.pipeline_mode<synchronous>, transform_indices = @transform_1, window_bounds = array<i64: 80, 32>}, {pipeline_mode = #tpu.pipeline_mode<synchronous>, transform_indices = @transform_2, window_bounds = array<i64: 96, 1>}, {transform_indices = @transform_3, window_bounds = array<i64: 4, 128>}]} {
    %c0 = arith.constant 0 : index
    %c0_0 = arith.constant 0 : index
    %0 = vector.load %arg1[%c0, %c0_0] : memref<11x128xf32, #tpu.memory_space<vmem>>, vector<11x128xf32>
    %1 = vector.extract_strided_slice %0 {offsets = [0, 0], sizes = [8, 128], strides = [1, 1]} : vector<11x128xf32> to vector<8x128xf32>
    %2 = arith.truncf %1 : vector<8x128xf32> to vector<8x128xbf16>
    %c0_1 = arith.constant 0 : index
    %c0_2 = arith.constant 0 : index
    %3 = vector.load %arg2[%c0_1, %c0_2] : memref<80x32xbf16, #tpu.memory_space<vmem>>, vector<32x8xbf16>
    %c32 = arith.constant 32 : index
    %c0_3 = arith.constant 0 : index
    %4 = vector.load %arg2[%c32, %c0_3] : memref<80x32xbf16, #tpu.memory_space<vmem>>, vector<32x32xbf16>
    %c64 = arith.constant 64 : index
    %c0_4 = arith.constant 0 : index
    %5 = vector.load %arg2[%c64, %c0_4] : memref<80x32xbf16, #tpu.memory_space<vmem>>, vector<16x32xbf16>
    %c0_5 = arith.constant 0 : index
    %c0_6 = arith.constant 0 : index
    %6 = vector.load %arg3[%c0_5, %c0_6] : memref<96x1xf32, #tpu.memory_space<vmem>>, vector<32x1xf32>
    %c32_7 = arith.constant 32 : index
    %c0_8 = arith.constant 0 : index
    %7 = vector.load %arg3[%c32_7, %c0_8] : memref<96x1xf32, #tpu.memory_space<vmem>>, vector<32x1xf32>
    %c64_9 = arith.constant 64 : index
    %c0_10 = arith.constant 0 : index
    %8 = vector.load %arg3[%c64_9, %c0_10] : memref<96x1xf32, #tpu.memory_space<vmem>>, vector<16x1xf32>
    %c80 = arith.constant 80 : index
    %c0_11 = arith.constant 0 : index
    %9 = vector.load %arg3[%c80, %c0_11] : memref<96x1xf32, #tpu.memory_space<vmem>>, vector<3x1xf32>
    %c88 = arith.constant 88 : index
    %c0_12 = arith.constant 0 : index
    %10 = vector.load %arg3[%c88, %c0_12] : memref<96x1xf32, #tpu.memory_space<vmem>>, vector<3x1xf32>
    %cst = arith.constant dense<0.000000e+00> : vector<32x128xf32>
    %11 = tpu.matmul %3, %2, %cst {dimension_numbers = #tpu.dot_dimension_numbers<[1], [0], [0], [1], [0, 0, 1, 1], [], []>} : vector<32x8xbf16>, vector<8x128xbf16>, vector<32x128xf32> -> vector<32x128xf32>
    %12 = vector.broadcast %6 : vector<32x1xf32> to vector<32x128xf32>
    %13 = arith.addf %11, %12 : vector<32x128xf32>
    %cst_13 = arith.constant 0.000000e+00 : f32
    %14 = vector.broadcast %cst_13 : f32 to vector<32x128xf32>
    %15 = arith.maximumf %13, %14 : vector<32x128xf32>
    %16 = arith.truncf %15 : vector<32x128xf32> to vector<32x128xbf16>
    %cst_14 = arith.constant dense<0.000000e+00> : vector<32x128xf32>
    %17 = tpu.matmul %4, %16, %cst_14 {dimension_numbers = #tpu.dot_dimension_numbers<[1], [0], [0], [1], [0, 0, 1, 1], [], []>} : vector<32x32xbf16>, vector<32x128xbf16>, vector<32x128xf32> -> vector<32x128xf32>
    %18 = vector.broadcast %7 : vector<32x1xf32> to vector<32x128xf32>
    %19 = arith.addf %17, %18 : vector<32x128xf32>
    %cst_15 = arith.constant 0.000000e+00 : f32
    %20 = vector.broadcast %cst_15 : f32 to vector<32x128xf32>
    %21 = arith.maximumf %19, %20 : vector<32x128xf32>
    %22 = arith.truncf %21 : vector<32x128xf32> to vector<32x128xbf16>
    %cst_16 = arith.constant dense<0.000000e+00> : vector<16x128xf32>
    %23 = tpu.matmul %5, %22, %cst_16 {dimension_numbers = #tpu.dot_dimension_numbers<[1], [0], [0], [1], [0, 0, 1, 1], [], []>} : vector<16x32xbf16>, vector<32x128xbf16>, vector<16x128xf32> -> vector<16x128xf32>
    %24 = vector.broadcast %8 : vector<16x1xf32> to vector<16x128xf32>
    %25 = arith.addf %23, %24 : vector<16x128xf32>
    %26 = vector.extract_strided_slice %0 {offsets = [8, 0], sizes = [3, 128], strides = [1, 1]} : vector<11x128xf32> to vector<3x128xf32>
    %27 = vector.extract_strided_slice %0 {offsets = [0, 0], sizes = [3, 128], strides = [1, 1]} : vector<11x128xf32> to vector<3x128xf32>
    %28 = arith.subf %26, %27 : vector<3x128xf32>
    %29 = vector.broadcast %9 : vector<3x1xf32> to vector<3x128xf32>
    %30 = arith.subf %28, %29 : vector<3x128xf32>
    %31 = vector.broadcast %10 : vector<3x1xf32> to vector<3x128xf32>
    %32 = arith.mulf %30, %31 : vector<3x128xf32>
    %33 = vector.extract_strided_slice %25 {offsets = [4, 0], sizes = [3, 128], strides = [1, 1]} : vector<16x128xf32> to vector<3x128xf32>
    %34 = arith.subf %32, %33 : vector<3x128xf32>
    %35 = arith.mulf %34, %34 : vector<3x128xf32>
    %36 = vector.extract_strided_slice %35 {offsets = [0, 0], sizes = [1, 128], strides = [1, 1]} : vector<3x128xf32> to vector<1x128xf32>
    %37 = vector.extract_strided_slice %35 {offsets = [1, 0], sizes = [1, 128], strides = [1, 1]} : vector<3x128xf32> to vector<1x128xf32>
    %38 = arith.addf %36, %37 : vector<1x128xf32>
    %39 = vector.extract_strided_slice %35 {offsets = [2, 0], sizes = [1, 128], strides = [1, 1]} : vector<3x128xf32> to vector<1x128xf32>
    %40 = arith.addf %38, %39 : vector<1x128xf32>
    %cst_17 = arith.constant -5.000000e-01 : f32
    %41 = vector.broadcast %cst_17 : f32 to vector<1x128xf32>
    %42 = arith.mulf %41, %40 : vector<1x128xf32>
    %cst_18 = arith.constant 2.75681567 : f32
    %43 = vector.broadcast %cst_18 : f32 to vector<1x128xf32>
    %44 = arith.subf %42, %43 : vector<1x128xf32>
    %45 = math.absf %33 : vector<3x128xf32>
    %46 = vector.extract_strided_slice %45 {offsets = [0, 0], sizes = [1, 128], strides = [1, 1]} : vector<3x128xf32> to vector<1x128xf32>
    %47 = vector.extract_strided_slice %45 {offsets = [1, 0], sizes = [1, 128], strides = [1, 1]} : vector<3x128xf32> to vector<1x128xf32>
    %48 = arith.addf %46, %47 : vector<1x128xf32>
    %49 = vector.extract_strided_slice %45 {offsets = [2, 0], sizes = [1, 128], strides = [1, 1]} : vector<3x128xf32> to vector<1x128xf32>
    %50 = arith.addf %48, %49 : vector<1x128xf32>
    %51 = vector.extract_strided_slice %25 {offsets = [7, 0], sizes = [3, 128], strides = [1, 1]} : vector<16x128xf32> to vector<3x128xf32>
    %52 = arith.subf %32, %51 : vector<3x128xf32>
    %53 = arith.mulf %52, %52 : vector<3x128xf32>
    %54 = vector.extract_strided_slice %53 {offsets = [0, 0], sizes = [1, 128], strides = [1, 1]} : vector<3x128xf32> to vector<1x128xf32>
    %55 = vector.extract_strided_slice %53 {offsets = [1, 0], sizes = [1, 128], strides = [1, 1]} : vector<3x128xf32> to vector<1x128xf32>
    %56 = arith.addf %54, %55 : vector<1x128xf32>
    %57 = vector.extract_strided_slice %53 {offsets = [2, 0], sizes = [1, 128], strides = [1, 1]} : vector<3x128xf32> to vector<1x128xf32>
    %58 = arith.addf %56, %57 : vector<1x128xf32>
    %cst_19 = arith.constant -5.000000e-01 : f32
    %59 = vector.broadcast %cst_19 : f32 to vector<1x128xf32>
    %60 = arith.mulf %59, %58 : vector<1x128xf32>
    %cst_20 = arith.constant 2.75681567 : f32
    %61 = vector.broadcast %cst_20 : f32 to vector<1x128xf32>
    %62 = arith.subf %60, %61 : vector<1x128xf32>
    %63 = math.absf %51 : vector<3x128xf32>
    %64 = vector.extract_strided_slice %63 {offsets = [0, 0], sizes = [1, 128], strides = [1, 1]} : vector<3x128xf32> to vector<1x128xf32>
    %65 = vector.extract_strided_slice %63 {offsets = [1, 0], sizes = [1, 128], strides = [1, 1]} : vector<3x128xf32> to vector<1x128xf32>
    %66 = arith.addf %64, %65 : vector<1x128xf32>
    %67 = vector.extract_strided_slice %63 {offsets = [2, 0], sizes = [1, 128], strides = [1, 1]} : vector<3x128xf32> to vector<1x128xf32>
    %68 = arith.addf %66, %67 : vector<1x128xf32>
    %69 = arith.addf %50, %68 : vector<1x128xf32>
    %70 = vector.extract_strided_slice %25 {offsets = [10, 0], sizes = [3, 128], strides = [1, 1]} : vector<16x128xf32> to vector<3x128xf32>
    %71 = arith.subf %32, %70 : vector<3x128xf32>
    %72 = arith.mulf %71, %71 : vector<3x128xf32>
    %73 = vector.extract_strided_slice %72 {offsets = [0, 0], sizes = [1, 128], strides = [1, 1]} : vector<3x128xf32> to vector<1x128xf32>
    %74 = vector.extract_strided_slice %72 {offsets = [1, 0], sizes = [1, 128], strides = [1, 1]} : vector<3x128xf32> to vector<1x128xf32>
    %75 = arith.addf %73, %74 : vector<1x128xf32>
    %76 = vector.extract_strided_slice %72 {offsets = [2, 0], sizes = [1, 128], strides = [1, 1]} : vector<3x128xf32> to vector<1x128xf32>
    %77 = arith.addf %75, %76 : vector<1x128xf32>
    %cst_21 = arith.constant -5.000000e-01 : f32
    %78 = vector.broadcast %cst_21 : f32 to vector<1x128xf32>
    %79 = arith.mulf %78, %77 : vector<1x128xf32>
    %cst_22 = arith.constant 2.75681567 : f32
    %80 = vector.broadcast %cst_22 : f32 to vector<1x128xf32>
    %81 = arith.subf %79, %80 : vector<1x128xf32>
    %82 = math.absf %70 : vector<3x128xf32>
    %83 = vector.extract_strided_slice %82 {offsets = [0, 0], sizes = [1, 128], strides = [1, 1]} : vector<3x128xf32> to vector<1x128xf32>
    %84 = vector.extract_strided_slice %82 {offsets = [1, 0], sizes = [1, 128], strides = [1, 1]} : vector<3x128xf32> to vector<1x128xf32>
    %85 = arith.addf %83, %84 : vector<1x128xf32>
    %86 = vector.extract_strided_slice %82 {offsets = [2, 0], sizes = [1, 128], strides = [1, 1]} : vector<3x128xf32> to vector<1x128xf32>
    %87 = arith.addf %85, %86 : vector<1x128xf32>
    %88 = arith.addf %69, %87 : vector<1x128xf32>
    %89 = vector.extract_strided_slice %25 {offsets = [13, 0], sizes = [3, 128], strides = [1, 1]} : vector<16x128xf32> to vector<3x128xf32>
    %90 = arith.subf %32, %89 : vector<3x128xf32>
    %91 = arith.mulf %90, %90 : vector<3x128xf32>
    %92 = vector.extract_strided_slice %91 {offsets = [0, 0], sizes = [1, 128], strides = [1, 1]} : vector<3x128xf32> to vector<1x128xf32>
    %93 = vector.extract_strided_slice %91 {offsets = [1, 0], sizes = [1, 128], strides = [1, 1]} : vector<3x128xf32> to vector<1x128xf32>
    %94 = arith.addf %92, %93 : vector<1x128xf32>
    %95 = vector.extract_strided_slice %91 {offsets = [2, 0], sizes = [1, 128], strides = [1, 1]} : vector<3x128xf32> to vector<1x128xf32>
    %96 = arith.addf %94, %95 : vector<1x128xf32>
    %cst_23 = arith.constant -5.000000e-01 : f32
    %97 = vector.broadcast %cst_23 : f32 to vector<1x128xf32>
    %98 = arith.mulf %97, %96 : vector<1x128xf32>
    %cst_24 = arith.constant 2.75681567 : f32
    %99 = vector.broadcast %cst_24 : f32 to vector<1x128xf32>
    %100 = arith.subf %98, %99 : vector<1x128xf32>
    %101 = math.absf %89 : vector<3x128xf32>
    %102 = vector.extract_strided_slice %101 {offsets = [0, 0], sizes = [1, 128], strides = [1, 1]} : vector<3x128xf32> to vector<1x128xf32>
    %103 = vector.extract_strided_slice %101 {offsets = [1, 0], sizes = [1, 128], strides = [1, 1]} : vector<3x128xf32> to vector<1x128xf32>
    %104 = arith.addf %102, %103 : vector<1x128xf32>
    %105 = vector.extract_strided_slice %101 {offsets = [2, 0], sizes = [1, 128], strides = [1, 1]} : vector<3x128xf32> to vector<1x128xf32>
    %106 = arith.addf %104, %105 : vector<1x128xf32>
    %107 = arith.addf %88, %106 : vector<1x128xf32>
    %108 = vector.extract_strided_slice %25 {offsets = [0, 0], sizes = [1, 128], strides = [1, 1]} : vector<16x128xf32> to vector<1x128xf32>
    %109 = vector.extract_strided_slice %25 {offsets = [1, 0], sizes = [1, 128], strides = [1, 1]} : vector<16x128xf32> to vector<1x128xf32>
    %110 = vector.extract_strided_slice %25 {offsets = [2, 0], sizes = [1, 128], strides = [1, 1]} : vector<16x128xf32> to vector<1x128xf32>
    %111 = vector.extract_strided_slice %25 {offsets = [3, 0], sizes = [1, 128], strides = [1, 1]} : vector<16x128xf32> to vector<1x128xf32>
    %112 = arith.maximumf %108, %109 : vector<1x128xf32>
    %113 = arith.maximumf %110, %111 : vector<1x128xf32>
    %114 = arith.maximumf %112, %113 : vector<1x128xf32>
    %115 = arith.subf %108, %114 : vector<1x128xf32>
    %116 = math.exp %115 : vector<1x128xf32>
    %117 = arith.subf %109, %114 : vector<1x128xf32>
    %118 = math.exp %117 : vector<1x128xf32>
    %119 = arith.addf %116, %118 : vector<1x128xf32>
    %120 = arith.subf %110, %114 : vector<1x128xf32>
    %121 = math.exp %120 : vector<1x128xf32>
    %122 = arith.addf %119, %121 : vector<1x128xf32>
    %123 = arith.subf %111, %114 : vector<1x128xf32>
    %124 = math.exp %123 : vector<1x128xf32>
    %125 = arith.addf %122, %124 : vector<1x128xf32>
    %126 = math.log %125 : vector<1x128xf32>
    %127 = arith.addf %114, %126 : vector<1x128xf32>
    %128 = arith.subf %108, %127 : vector<1x128xf32>
    %129 = arith.addf %128, %44 : vector<1x128xf32>
    %130 = arith.subf %109, %127 : vector<1x128xf32>
    %131 = arith.addf %130, %62 : vector<1x128xf32>
    %132 = arith.subf %110, %127 : vector<1x128xf32>
    %133 = arith.addf %132, %81 : vector<1x128xf32>
    %134 = arith.subf %111, %127 : vector<1x128xf32>
    %135 = arith.addf %134, %100 : vector<1x128xf32>
    %136 = arith.maximumf %129, %131 : vector<1x128xf32>
    %137 = arith.maximumf %133, %135 : vector<1x128xf32>
    %138 = arith.maximumf %136, %137 : vector<1x128xf32>
    %139 = arith.subf %129, %138 : vector<1x128xf32>
    %140 = math.exp %139 : vector<1x128xf32>
    %141 = arith.subf %131, %138 : vector<1x128xf32>
    %142 = math.exp %141 : vector<1x128xf32>
    %143 = arith.addf %140, %142 : vector<1x128xf32>
    %144 = arith.subf %133, %138 : vector<1x128xf32>
    %145 = math.exp %144 : vector<1x128xf32>
    %146 = arith.addf %143, %145 : vector<1x128xf32>
    %147 = arith.subf %135, %138 : vector<1x128xf32>
    %148 = math.exp %147 : vector<1x128xf32>
    %149 = arith.addf %146, %148 : vector<1x128xf32>
    %150 = math.log %149 : vector<1x128xf32>
    %151 = arith.addf %138, %150 : vector<1x128xf32>
    %152 = math.absf %32 : vector<3x128xf32>
    %153 = vector.extract_strided_slice %152 {offsets = [0, 0], sizes = [1, 128], strides = [1, 1]} : vector<3x128xf32> to vector<1x128xf32>
    %154 = vector.extract_strided_slice %152 {offsets = [1, 0], sizes = [1, 128], strides = [1, 1]} : vector<3x128xf32> to vector<1x128xf32>
    %155 = arith.addf %153, %154 : vector<1x128xf32>
    %156 = vector.extract_strided_slice %152 {offsets = [2, 0], sizes = [1, 128], strides = [1, 1]} : vector<3x128xf32> to vector<1x128xf32>
    %157 = arith.addf %155, %156 : vector<1x128xf32>
    %158 = math.absf %28 : vector<3x128xf32>
    %159 = vector.extract_strided_slice %158 {offsets = [0, 0], sizes = [1, 128], strides = [1, 1]} : vector<3x128xf32> to vector<1x128xf32>
    %160 = vector.extract_strided_slice %158 {offsets = [1, 0], sizes = [1, 128], strides = [1, 1]} : vector<3x128xf32> to vector<1x128xf32>
    %161 = arith.addf %159, %160 : vector<1x128xf32>
    %162 = vector.extract_strided_slice %158 {offsets = [2, 0], sizes = [1, 128], strides = [1, 1]} : vector<3x128xf32> to vector<1x128xf32>
    %163 = arith.addf %161, %162 : vector<1x128xf32>
    %c0_25 = arith.constant 0 : index
    %c0_26 = arith.constant 0 : index
    %164 = vector.load %arg4[%c0_25, %c0_26] : memref<4x128xf32, #tpu.memory_space<vmem>>, vector<1x128xf32>
    tpu.vector_store %arg4[%c0_25, %c0_26], %151 {strides = array<i32>} : memref<4x128xf32, #tpu.memory_space<vmem>>, vector<1x128xf32>,
    %c1 = arith.constant 1 : index
    %c0_27 = arith.constant 0 : index
    %165 = vector.load %arg4[%c1, %c0_27] : memref<4x128xf32, #tpu.memory_space<vmem>>, vector<1x128xf32>
    tpu.vector_store %arg4[%c1, %c0_27], %107 {strides = array<i32>} : memref<4x128xf32, #tpu.memory_space<vmem>>, vector<1x128xf32>,
    %c2 = arith.constant 2 : index
    %c0_28 = arith.constant 0 : index
    %166 = vector.load %arg4[%c2, %c0_28] : memref<4x128xf32, #tpu.memory_space<vmem>>, vector<1x128xf32>
    tpu.vector_store %arg4[%c2, %c0_28], %157 {strides = array<i32>} : memref<4x128xf32, #tpu.memory_space<vmem>>, vector<1x128xf32>,
    %c3 = arith.constant 3 : index
    %c0_29 = arith.constant 0 : index
    %167 = vector.load %arg4[%c3, %c0_29] : memref<4x128xf32, #tpu.memory_space<vmem>>, vector<1x128xf32>
    tpu.vector_store %arg4[%c3, %c0_29], %163 {strides = array<i32>} : memref<4x128xf32, #tpu.memory_space<vmem>>, vector<1x128xf32>,
    return
  }
  func.func @transform_0(%arg0: i32) -> (i32, i32) {
    %c0_i32 = arith.constant 0 : i32
    %c0_i32_0 = arith.constant 0 : i32
    return %c0_i32, %arg0 : i32, i32
  }
  func.func @transform_1(%arg0: i32) -> (i32, i32) {
    %c0_i32 = arith.constant 0 : i32
    %c0_i32_0 = arith.constant 0 : i32
    %c0_i32_1 = arith.constant 0 : i32
    return %c0_i32, %c0_i32_0 : i32, i32
  }
  func.func @transform_2(%arg0: i32) -> (i32, i32) {
    %c0_i32 = arith.constant 0 : i32
    %c0_i32_0 = arith.constant 0 : i32
    %c0_i32_1 = arith.constant 0 : i32
    return %c0_i32, %c0_i32_0 : i32, i32
  }
  func.func @transform_3(%arg0: i32) -> (i32, i32) {
    %c0_i32 = arith.constant 0 : i32
    %c0_i32_0 = arith.constant 0 : i32
    return %c0_i32, %arg0 : i32, i32
  }
}

</mosaic_0001>

<llo_original>
// kernel: tpu_custom_call.1
$region0: #{tpu_custom_call.1}
  #allocation0 [shape = 'u32[]', space=smem, size = 0x4, offset = 0x4, fixed_abs, tag = 'smem constant byte address 0x4 - core index']
  #allocation1 [shape = 'u32[144,128]{1,0:T(1,128)}', space=vmem, size = 0x12000, scoped, tag = 'internal scratch']
  %s0 = inlined_call_operand.vmem [shape: f32[11,128], index: 0, kind: input, shape index: {}]
  %s1 = inlined_call_operand.vmem [shape: bf16[80,32], index: 1, kind: input, shape index: {}]
  %s2 = inlined_call_operand.vmem [shape: f32[96,1], index: 2, kind: input, shape index: {}]
  %s3 = inlined_call_operand.hbm [shape: f32[4,128], index: 3, kind: output, shape index: {}]
  %s4 = sld [smem:[#allocation0]]
  $region22: #{tpu_custom_call.1} parent=0
    _
  %s6 = ssub.s32 1, %s4
  %s7 = scalar_select 0, %s6, %s4
  $region1: #{tpu_custom_call.1} parent=0
    #allocation2 [shape = 'u8[2048]{0}', space=vmem, size = 0x800, scoped, tag = 'output window, operand 0, single buffered']
    #allocation3 [shape = 's32[1]{0}', space=sflag, size = 0x4, scoped, tag = 'scoped memory for tpu_custom_call.1']
    %8 = vsyncpa [#allocation3], 0
    // Predicated region
    $region2: #{tpu_custom_call.1} parent=1 // pred_check
      _
    $region3: #{tpu_custom_call.1} parent=1 // pred_check_branch
      %10 = sbr.rel (0) target = $region5
    $region4: #{tpu_custom_call.1} parent=1 // pred_region
      _
    $region5: #{tpu_custom_call.1} parent=1 // pred_fallthru
      _
    // Predicated region
    $region6: #{tpu_custom_call.1} parent=1 // pred_check
      _
    $region7: #{tpu_custom_call.1} parent=1 // pred_check_branch
      %12 = sbr.rel (0) target = $region9
    $region8: #{tpu_custom_call.1} parent=1 // pred_region
      _
    $region9: #{tpu_custom_call.1} parent=1 // pred_fallthru
      _
    // Predicated region
    $region10: #{tpu_custom_call.1} parent=1 // pred_check
      _
    $region11: #{tpu_custom_call.1} parent=1 // pred_check_branch
      %14 = sbr.rel (0) target = $region13
    $region12: #{tpu_custom_call.1} parent=1 // pred_region
      _
    $region13: #{tpu_custom_call.1} parent=1 // pred_fallthru
      _
    %v16 = vld [vmem:[%s0] sm:$0xff]
    %v17 = vld [vmem:[%s0 + $0x8] sm:$0x7]
    %v18 = vpack.c.bf16 %v16, %v16
    %v19 = vld [vmem:[%s1] sm:$0xf]
    %v20 = vld [vmem:[%s1 + $0x4] sm:$0xf]
    %v21 = vld [vmem:[%s1 + $0x8] sm:$0xf]
    %v22 = vld [vmem:[%s1 + $0xc] sm:$0xf]
    %v23 = vld [vmem:[%s1 + $0x10] sm:$0xf]
    %v24 = vld [vmem:[%s1 + $0x14] sm:$0xf]
    %v25 = vld [vmem:[%s1 + $0x18] sm:$0xf]
    %v26 = vld [vmem:[%s1 + $0x1c] sm:$0xf]
    %v27 = vld [vmem:[%s1 + $0x20] sm:$0xf]
    %v28 = vld [vmem:[%s1 + $0x24] sm:$0xf]
    %v29 = vld [vmem:[%s2] sm:$0xff]
    %v30 = vld [vmem:[%s2 + $0x8] sm:$0xff]
    %v31 = vld [vmem:[%s2 + $0x10] sm:$0xff]
    %v32 = vld [vmem:[%s2 + $0x18] sm:$0xff]
    %v33 = vld [vmem:[%s2 + $0x20] sm:$0xff]
    %v34 = vld [vmem:[%s2 + $0x28] sm:$0xff]
    %v35 = vld [vmem:[%s2 + $0x30] sm:$0xff]
    %v36 = vld [vmem:[%s2 + $0x38] sm:$0xff]
    %v37 = vld [vmem:[%s2 + $0x40] sm:$0xff]
    %v38 = vld [vmem:[%s2 + $0x48] sm:$0xff]
    %v39 = vld [vmem:[%s2 + $0x50] sm:$0x7]
    %v40 = vld [vmem:[%s2 + $0x58] sm:$0x7]
    %42 = vset.pattern.permute.xlu0 0
    %43 = vperm.xlu0 %42, %v29
    %v44 = vpop.permute.xlu0 %43
    %47 = vset.pattern.permute.xlu0 0
    %48 = vperm.xlu0 %47, %v30
    %v49 = vpop.permute.xlu0 %48
    %52 = vset.pattern.permute.xlu0 0
    %53 = vperm.xlu0 %52, %v31
    %v54 = vpop.permute.xlu0 %53
    %57 = vset.pattern.permute.xlu0 0
    %58 = vperm.xlu0 %57, %v32
    %v59 = vpop.permute.xlu0 %58
    %v65 = vunpack.c.l.b16 %v19
    %v66 = vunpack.c.l.b16 %v20
    %v67 = vunpack.c.l.b16 %v21
    %v68 = vunpack.c.l.b16 %v22
    %v69 = vpack.c.b16 %v66, %v65
    %v70 = vpack.c.b16 %v68, %v67
    %vm71 = vcmask 64512
    %v73 = vsel %vm71, %v69, 0
    %v76 = vsel %vm71, %v70, 0
    %vm78 = vcmask 1043456
    %v80 = vsel %vm78, %v18, 0
    %82 = vmatprep.subr.bf16.mxu0 0
    %83 = vmatpush1.bf16.msra.mxu0 0
    %84 = vmatprep.subr.bf16.mxu0 0
    %85 = vmatpush1.bf16.msra.mxu0 0
    %86 = vmatprep.subr.bf16.mxu0 0
    %87 = vmatpush1.bf16.msra.mxu0 0
    %88 = vmatprep.subr.bf16.mxu0 0
    %89 = vmatpush1.bf16.msra.mxu0 0
    %90 = vmatprep.subr.bf16.mxu0 0
    %91 = vmatpush1.bf16.msra.mxu0 0
    %92 = vmatprep.subr.bf16.mxu0 0
    %93 = vmatpush1.bf16.msra.mxu0 0
    %94 = vmatprep.subr.bf16.mxu0 0
    %95 = vmatpush1.bf16.msra.mxu0 0
    %96 = vmatprep.subr.bf16.mxu0 0
    %97 = vmatpush1.bf16.msra.mxu0 %v80
    %98 = vmatprep.subr.bf16.mxu0 0
    %99 = vmatpush2.bf16.msra.mxu0 0
    %100 = vmatprep.subr.bf16.mxu0 0
    %101 = vmatpush2.bf16.msra.mxu0 0
    %102 = vmatprep.subr.bf16.mxu0 0
    %103 = vmatpush2.bf16.msra.mxu0 0
    %104 = vmatprep.subr.bf16.mxu0 0
    %105 = vmatpush2.bf16.msra.mxu0 0
    %106 = vmatprep.subr.bf16.mxu0 0
    %107 = vmatpush2.bf16.msra.mxu0 0
    %108 = vmatprep.subr.bf16.mxu0 0
    %109 = vmatpush2.bf16.msra.mxu0 0
    %110 = vmatprep.subr.bf16.mxu0 0
    %111 = vmatpush2.bf16.msra.mxu0 0
    %112 = vmatprep.subr.bf16.mxu0 0
    %113 = vmatpush2.bf16.msra.mxu0 0
    %114 = vmatprep.mubr.bf16.mxu0 0
    %115 = vmatmul.mubr.bf16.gmra.mxu0 %v73
    %v116 = vpop.f32.mrf.mxu0
    %v117 = vadd.f32 %v44, %v116
    %v118 = vpop.f32.mrf.mxu0
    %v119 = vpop.f32.mrf.mxu0
    %v120 = vadd.f32 %v49, %v119
    %v121 = vpop.f32.mrf.mxu0
    %122 = vmatprep.mubr.bf16.mxu0 0
    %123 = vmatmul.mubr.bf16.gmra.mxu0 %v76
    %v124 = vpop.f32.mrf.mxu0
    %v125 = vadd.f32 %v54, %v124
    %v126 = vpop.f32.mrf.mxu0
    %v127 = vpop.f32.mrf.mxu0
    %v128 = vadd.f32 %v59, %v127
    %v129 = vpop.f32.mrf.mxu0
    %130 = vdwg.mxu0
    %v131 = vmax.f32 %v117, 0.0
    %v132 = vmax.f32 %v120, 0.0
    %v133 = vmax.f32 %v125, 0.0
    %v134 = vmax.f32 %v128, 0.0
    %v135 = vpack.c.bf16 %v132, %v131
    %v136 = vpack.c.bf16 %v134, %v133
    %138 = vset.pattern.permute.xlu0 0
    %139 = vperm.xlu0 %138, %v33
    %v140 = vpop.permute.xlu0 %139
    %143 = vset.pattern.permute.xlu0 0
    %144 = vperm.xlu0 %143, %v34
    %v145 = vpop.permute.xlu0 %144
    %148 = vset.pattern.permute.xlu0 0
    %149 = vperm.xlu0 %148, %v35
    %v150 = vpop.permute.xlu0 %149
    %153 = vset.pattern.permute.xlu0 0
    %154 = vperm.xlu0 %153, %v36
    %v155 = vpop.permute.xlu0 %154
    %v161 = vunpack.c.l.b16 %v23
    %v162 = vunpack.c.l.b16 %v24
    %v163 = vunpack.c.l.b16 %v25
    %v164 = vunpack.c.l.b16 %v26
    %v165 = vpack.c.b16 %v162, %v161
    %v166 = vpack.c.b16 %v164, %v163
    %vm167 = vcmask 261120
    %v169 = vsel %vm167, %v165, 0
    %v172 = vsel %vm167, %v166, 0
    %174 = vmatprep.subr.bf16.mxu0 0
    %175 = vmatpush1.bf16.msra.mxu0 0
    %176 = vmatprep.subr.bf16.mxu0 0
    %177 = vmatpush1.bf16.msra.mxu0 0
    %178 = vmatprep.subr.bf16.mxu0 0
    %179 = vmatpush1.bf16.msra.mxu0 0
    %180 = vmatprep.subr.bf16.mxu0 0
    %181 = vmatpush1.bf16.msra.mxu0 0
    %182 = vmatprep.subr.bf16.mxu0 0
    %183 = vmatpush1.bf16.msra.mxu0 0
    %184 = vmatprep.subr.bf16.mxu0 0
    %185 = vmatpush1.bf16.msra.mxu0 0
    %186 = vmatprep.subr.bf16.mxu0 0
    %187 = vmatpush1.bf16.msra.mxu0 %v136
    %188 = vmatprep.subr.bf16.mxu0 0
    %189 = vmatpush1.bf16.msra.mxu0 %v135
    %190 = vmatprep.subr.bf16.mxu0 0
    %191 = vmatpush2.bf16.msra.mxu0 0
    %192 = vmatprep.subr.bf16.mxu0 0
    %193 = vmatpush2.bf16.msra.mxu0 0
    %194 = vmatprep.subr.bf16.mxu0 0
    %195 = vmatpush2.bf16.msra.mxu0 0
    %196 = vmatprep.subr.bf16.mxu0 0
    %197 = vmatpush2.bf16.msra.mxu0 0
    %198 = vmatprep.subr.bf16.mxu0 0
    %199 = vmatpush2.bf16.msra.mxu0 0
    %200 = vmatprep.subr.bf16.mxu0 0
    %201 = vmatpush2.bf16.msra.mxu0 0
    %202 = vmatprep.subr.bf16.mxu0 0
    %203 = vmatpush2.bf16.msra.mxu0 0
    %204 = vmatprep.subr.bf16.mxu0 0
    %205 = vmatpush2.bf16.msra.mxu0 0
    %206 = vmatprep.mubr.bf16.mxu0 0
    %207 = vmatmul.mubr.bf16.gmra.mxu0 %v169
    %v208 = vpop.f32.mrf.mxu0
    %v209 = vadd.f32 %v140, %v208
    %v210 = vpop.f32.mrf.mxu0
    %v211 = vpop.f32.mrf.mxu0
    %v212 = vadd.f32 %v145, %v211
    %v213 = vpop.f32.mrf.mxu0
    %214 = vmatprep.mubr.bf16.mxu0 0
    %215 = vmatmul.mubr.bf16.gmra.mxu0 %v172
    %v216 = vpop.f32.mrf.mxu0
    %v217 = vadd.f32 %v150, %v216
    %v218 = vpop.f32.mrf.mxu0
    %v219 = vpop.f32.mrf.mxu0
    %v220 = vadd.f32 %v155, %v219
    %v221 = vpop.f32.mrf.mxu0
    %222 = vdwg.mxu0
    %v223 = vmax.f32 %v209, 0.0
    %v224 = vmax.f32 %v212, 0.0
    %v225 = vmax.f32 %v217, 0.0
    %v226 = vmax.f32 %v220, 0.0
    %v227 = vpack.c.bf16 %v224, %v223
    %v228 = vpack.c.bf16 %v226, %v225
    %230 = vset.pattern.permute.xlu0 0
    %231 = vperm.xlu0 %230, %v37
    %v232 = vpop.permute.xlu0 %231
    %235 = vset.pattern.permute.xlu0 0
    %236 = vperm.xlu0 %235, %v38
    %v237 = vpop.permute.xlu0 %236
    %v241 = vunpack.c.l.b16 %v27
    %v242 = vunpack.c.l.b16 %v28
    %v243 = vpack.c.b16 %v242, %v241
    %v245 = vsel %vm167, %v243, 0
    %247 = vmatprep.subr.bf16.mxu0 0
    %248 = vmatpush1.bf16.msra.mxu0 0
    %249 = vmatprep.subr.bf16.mxu0 0
    %250 = vmatpush1.bf16.msra.mxu0 0
    %251 = vmatprep.subr.bf16.mxu0 0
    %252 = vmatpush1.bf16.msra.mxu0 0
    %253 = vmatprep.subr.bf16.mxu0 0
    %254 = vmatpush1.bf16.msra.mxu0 0
    %255 = vmatprep.subr.bf16.mxu0 0
    %256 = vmatpush1.bf16.msra.mxu0 0
    %257 = vmatprep.subr.bf16.mxu0 0
    %258 = vmatpush1.bf16.msra.mxu0 0
    %259 = vmatprep.subr.bf16.mxu0 0
    %260 = vmatpush1.bf16.msra.mxu0 %v228
    %261 = vmatprep.subr.bf16.mxu0 0
    %262 = vmatpush1.bf16.msra.mxu0 %v227
    %263 = vmatprep.subr.bf16.mxu0 0
    %264 = vmatpush2.bf16.msra.mxu0 0
    %265 = vmatprep.subr.bf16.mxu0 0
    %266 = vmatpush2.bf16.msra.mxu0 0
    %267 = vmatprep.subr.bf16.mxu0 0
    %268 = vmatpush2.bf16.msra.mxu0 0
    %269 = vmatprep.subr.bf16.mxu0 0
    %270 = vmatpush2.bf16.msra.mxu0 0
    %271 = vmatprep.subr.bf16.mxu0 0
    %272 = vmatpush2.bf16.msra.mxu0 0
    %273 = vmatprep.subr.bf16.mxu0 0
    %274 = vmatpush2.bf16.msra.mxu0 0
    %275 = vmatprep.subr.bf16.mxu0 0
    %276 = vmatpush2.bf16.msra.mxu0 0
    %277 = vmatprep.subr.bf16.mxu0 0
    %278 = vmatpush2.bf16.msra.mxu0 0
    %279 = vmatprep.mubr.bf16.mxu0 0
    %280 = vmatmul.mubr.bf16.gmra.mxu0 %v245
    %v281 = vpop.f32.mrf.mxu0
    %v282 = vadd.f32 %v232, %v281
    %v283 = vpop.f32.mrf.mxu0
    %v284 = vpop.f32.mrf.mxu0
    %v285 = vadd.f32 %v237, %v284
    %v286 = vpop.f32.mrf.mxu0
    %287 = vdwg.mxu0
    %v288 = vsub.f32 %v17, %v16
    %290 = vset.pattern.permute.xlu0 0
    %291 = vperm.xlu0 %290, %v39
    %v292 = vpop.permute.xlu0 %291
    %v294 = vsub.f32 %v288, %v292
    %296 = vset.pattern.permute.xlu0 0
    %297 = vperm.xlu0 %296, %v40
    %v298 = vpop.permute.xlu0 %297
    %v300 = vmul.f32 %v294, %v298
    %v302 = vrot.slane %v282, 4
    %v304 = vsub.f32 %v300, %v302
    %v305 = vmul.f32 %v304, %v304
    %v307 = vrot.slane %v305, 1
    %v309 = vadd.f32 %v305, %v307
    %v310 = vrot.slane %v305, 2
    %v312 = vadd.f32 %v309, %v310
    %v313 = vmul.f32 %v312, -0.5
    %v314 = vsub.f32 %v313, 2.7568157
    %v315 = vand.u32 2147483647, %v282
    %v317 = vrot.slane %v315, 1
    %v319 = vadd.f32 %v315, %v317
    %v320 = vrot.slane %v315, 2
    %v322 = vadd.f32 %v319, %v320
    %vm324 = vcmask 1040384
    %v325 = vrot.slane %v282, 7
    %v326 = vrot.slane %v285, 7
    %v327 = vsel %vm324, %v325, %v326
    %v329 = vsub.f32 %v300, %v327
    %v330 = vmul.f32 %v329, %v329
    %v332 = vrot.slane %v330, 1
    %v334 = vadd.f32 %v330, %v332
    %v335 = vrot.slane %v330, 2
    %v337 = vadd.f32 %v334, %v335
    %v338 = vmul.f32 %v337, -0.5
    %v339 = vsub.f32 %v338, 2.7568157
    %v340 = vand.u32 2147483647, %v285
    %v342 = vrot.slane %v340, 1
    %v344 = vadd.f32 %v315, %v342
    %v345 = vrot.slane %v340, 2
    %v347 = vadd.f32 %v344, %v345
    %v349 = vrot.slane %v347, 3
    %v351 = vadd.f32 %v322, %v349
    %v352 = vrot.slane %v285, 2
    %v354 = vsub.f32 %v300, %v352
    %v355 = vmul.f32 %v354, %v354
    %v357 = vrot.slane %v355, 1
    %v359 = vadd.f32 %v355, %v357
    %v360 = vrot.slane %v355, 2
    %v362 = vadd.f32 %v359, %v360
    %v363 = vmul.f32 %v362, -0.5
    %v364 = vsub.f32 %v363, 2.7568157
    %v365 = vadd.f32 %v340, %v342
    %v366 = vadd.f32 %v365, %v345
    %v368 = vrot.slane %v366, 6
    %v370 = vadd.f32 %v351, %v368
    %v371 = vrot.slane %v285, 5
    %v373 = vsub.f32 %v300, %v371
    %v374 = vmul.f32 %v373, %v373
    %v376 = vrot.slane %v374, 1
    %v378 = vadd.f32 %v374, %v376
    %v379 = vrot.slane %v374, 2
    %v381 = vadd.f32 %v378, %v379
    %v382 = vmul.f32 %v381, -0.5
    %v383 = vsub.f32 %v382, 2.7568157
    %v384 = vrot.slane %v366, 1
    %v386 = vadd.f32 %v370, %v384
    %v387 = vrot.slane %v282, 1
    %v389 = vmax.f32 %v282, %v387
    %v391 = vrot.slane %v389, 2
    %v393 = vmax.f32 %v389, %v391
    %v394 = vsub.f32 %v282, %v393
    %v395 = vmul.f32 %v394, 1.442695
    %v396 = vpow.pop %v395
    %v398 = vrot.slane %v393, 7
    %v400 = vsub.f32 %v282, %v398
    %v401 = vmul.f32 %v400, 1.442695
    %v402 = vpow.pop %v401
    %v404 = vrot.slane %v402, 1
    %v406 = vadd.f32 %v396, %v404
    %v407 = vrot.slane %v393, 6
    %v409 = vsub.f32 %v282, %v407
    %v410 = vmul.f32 %v409, 1.442695
    %v411 = vpow.pop %v410
    %v413 = vrot.slane %v411, 2
    %v415 = vadd.f32 %v406, %v413
    %v416 = vrot.slane %v393, 5
    %v418 = vsub.f32 %v282, %v416
    %v419 = vmul.f32 %v418, 1.442695
    %v420 = vpow.pop %v419
    %v422 = vrot.slane %v420, 3
    %v424 = vadd.f32 %v415, %v422
    %v425 = vlog2.pop %v424
    %v426 = vmul.f32 %v425, 0.6931472
    %v427 = vadd.f32 %v393, %v426
    %v428 = vsub.f32 %v282, %v427
    %v429 = vadd.f32 %v428, %v314
    %v431 = vrot.slane %v427, 7
    %v433 = vsub.f32 %v282, %v431
    %v435 = vrot.slane %v339, 7
    %v437 = vadd.f32 %v433, %v435
    %v438 = vrot.slane %v427, 6
    %v440 = vsub.f32 %v282, %v438
    %v442 = vrot.slane %v364, 6
    %v444 = vadd.f32 %v440, %v442
    %v445 = vrot.slane %v427, 5
    %v447 = vsub.f32 %v282, %v445
    %v449 = vrot.slane %v383, 5
    %v451 = vadd.f32 %v447, %v449
    %v453 = vrot.slane %v437, 1
    %v455 = vmax.f32 %v429, %v453
    %v457 = vrot.slane %v451, 1
    %v459 = vmax.f32 %v444, %v457
    %v461 = vrot.slane %v459, 2
    %v463 = vmax.f32 %v455, %v461
    %v464 = vsub.f32 %v429, %v463
    %v465 = vmul.f32 %v464, 1.442695
    %v466 = vpow.pop %v465
    %v468 = vrot.slane %v463, 7
    %v470 = vsub.f32 %v437, %v468
    %v471 = vmul.f32 %v470, 1.442695
    %v472 = vpow.pop %v471
    %v474 = vrot.slane %v472, 1
    %v476 = vadd.f32 %v466, %v474
    %v477 = vrot.slane %v463, 6
    %v479 = vsub.f32 %v444, %v477
    %v480 = vmul.f32 %v479, 1.442695
    %v481 = vpow.pop %v480
    %v483 = vrot.slane %v481, 2
    %v485 = vadd.f32 %v476, %v483
    %v486 = vrot.slane %v463, 5
    %v488 = vsub.f32 %v451, %v486
    %v489 = vmul.f32 %v488, 1.442695
    %v490 = vpow.pop %v489
    %v492 = vrot.slane %v490, 3
    %v494 = vadd.f32 %v485, %v492
    %v495 = vlog2.pop %v494
    %v496 = vmul.f32 %v495, 0.6931472
    %v497 = vadd.f32 %v463, %v496
    %v498 = vand.u32 2147483647, %v300
    %v500 = vrot.slane %v498, 1
    %v502 = vadd.f32 %v498, %v500
    %v503 = vrot.slane %v498, 2
    %v505 = vadd.f32 %v502, %v503
    %v506 = vand.u32 2147483647, %v288
    %v508 = vrot.slane %v506, 1
    %v510 = vadd.f32 %v506, %v508
    %v511 = vrot.slane %v506, 2
    %v513 = vadd.f32 %v510, %v511
    %514 = vst [vmem:[#allocation2] sm:$0x1] %v497
    %515 = vst [vmem:[#allocation2 - $0x3] sm:$0x10] %v386
    %516 = vst [vmem:[#allocation2 + $0x2] sm:$0x1] %v505
    %517 = vst [vmem:[#allocation2 + $0x3] sm:$0x1] %v513
    // Predicated region
    $region14: #{tpu_custom_call.1} parent=1 // pred_check
      _
    $region15: #{tpu_custom_call.1} parent=1 // pred_check_branch
      %519 = sbr.rel (0) target = $region17
    $region16: #{tpu_custom_call.1} parent=1 // pred_region
      %s521 = ssub.s32 64, 64
      %522 = vsyncadd [#allocation3], %s521
      %s524 = sshll.u32 [#allocation2], 4
      %s525 = int_to_ptr.vmem [resolvable:$true] %s524
      %527 = dma.vmem_to_hbm [thread:$0]  %s525, 64, %s3, [#allocation3]
    $region17: #{tpu_custom_call.1} parent=1 // pred_fallthru
      _
    // Predicated region
    $region18: #{tpu_custom_call.1} parent=1 // pred_check
      _
    $region19: #{tpu_custom_call.1} parent=1 // pred_check_branch
      %529 = sbr.rel (0) target = $region21
    $region20: #{tpu_custom_call.1} parent=1 // pred_region
      %530 = dma.done [#allocation3], 64
    $region21: #{tpu_custom_call.1} parent=1 // pred_fallthru
      _
    %531 = vsyncpa [#allocation3], 1

</llo_original>
